<compile_context>
chip_gen: v7x
topology: tpu7x:2x2x1
jax: 0.10.0
libtpu: 0.0.40
codegen_flags: <defaults>
</compile_context>

<pallas_src>
import jax
import jax.numpy as jnp
from jax import lax
from jax.experimental import pallas as pl
from jax.experimental.pallas import tpu as pltpu

# module-consistent static shapes
C_IN = 4
H = W = 16
C_BODY = 32                  # body conv output channels
C_POL = 2                    # policy head channels
KH = KW = 3
LANES_IN = W * C_IN          # 64  : lane-dense input row width  (x, c)
LANES_H = W * C_BODY         # 512 : lane-dense hidden row width (w, co)
LANES_HEAD = C_POL * W + W   # 48  : fused head width: policy [0,32) | value [32,48)


def _net_kernel(xp_ref, wband_ref, b1_ref, whead_ref, bhead_ref, wfc_ref, bfc_ref,
                pol_ref, val_ref):
    tb = xp_ref.shape[0]
    tm = tb * H
    xp = xp_ref[...]                                       # [TB, H+2, 64] f32

    # 3x3 "SAME" conv == three accumulated banded matmuls over the dy row
    # shift (the x-halo is encoded as zero entries of wband).  No im2col
    # gather / lane-concatenate; every matmul operand is lane-dense.
    h = jnp.dot(xp[:, 0:H, :].reshape(tm, LANES_IN), wband_ref[0],
                preferred_element_type=jnp.float32)        # [TB*16, 512]
    for dy in range(1, KH):
        h = h + jnp.dot(xp[:, dy:dy + H, :].reshape(tm, LANES_IN), wband_ref[dy],
                        preferred_element_type=jnp.float32)
    h = jnp.maximum(h + b1_ref[...], 0.0)                  # f32 bias + ReLU

    # fused policy+value 1x1 heads as one banded matmul -> [TB*16, 48]
    hd = jnp.dot(h, whead_ref[...], preferred_element_type=jnp.float32)
    hd = hd + bhead_ref[...]

    pol_ref[...] = hd[:, :C_POL * W]                       # [TB*16, 32] policy logits

    # value head: ReLU -> weighted spatial sum (VPU mul + tiny reduces) -> tanh.
    # (replaces the TB^2 block-diagonal FC weight of the previous version)
    vr = jnp.maximum(hd[:, C_POL * W:], 0.0).reshape(tb, H, W)
    v = jnp.sum(vr * wfc_ref[...], axis=-1)                # [TB, 16]
    v = jnp.sum(v, axis=-1, keepdims=True)                 # [TB, 1]
    val_ref[...] = jnp.tanh(v + bfc_ref[0, 0])


def _pack_weights(params):
    """Pack the PyTorch-layout params into lane-dense banded kernel weights.

    (In a real deployment this is done once at model-load time, not per call.)
    """
    eye = jnp.eye(W, dtype=jnp.float32)

    # banded 3x3 conv weight:
    #   wband[dy, x*C_IN + c, w*C_BODY + co] = w1[dy, dx, c, co], x = w + dx - 1
    # entries with x outside [0, W) are dropped == implicit zero x-padding.
    bands = []
    for dy in range(KH):
        band = jnp.zeros((LANES_IN, LANES_H), jnp.float32)
        for dx in range(KW):
            blk = jnp.kron(eye, params["w1"][dy, dx].astype(jnp.float32))   # [64, 512]
            blk = jnp.pad(blk, ((C_IN, C_IN), (0, 0)))                      # [72, 512]
            s = (2 - dx) * C_IN
            band = band + blk[s:s + LANES_IN]
        bands.append(band)
    wband = jnp.stack(bands, axis=0)                                        # [3, 64, 512]

    b1row = jnp.tile(params["b1"].astype(jnp.float32), W).reshape(1, LANES_H)

    # fused banded 1x1 heads: cols [0,32) policy (cp*W + w), cols [32,48) value (w)
    wp = params["wp"].astype(jnp.float32)
    wv = params["wv"].astype(jnp.float32)
    whead = jnp.concatenate(
        [jnp.kron(eye, wp[:, c:c + 1]) for c in range(C_POL)] + [jnp.kron(eye, wv)],
        axis=1)                                                             # [512, 48]
    bhead = jnp.concatenate(
        [jnp.repeat(params["bp"].astype(jnp.float32), W),
         jnp.repeat(params["bv"].astype(jnp.float32), W)]).reshape(1, LANES_HEAD)

    wfc_hw = params["wfc"].astype(jnp.float32).reshape(H, W)                # [16, 16]
    bfc = params["bfc"].astype(jnp.float32).reshape(1, 1)
    return wband, b1row, whead, bhead, wfc_hw, bfc


def _pick_tb(B):
    """Boards per grid step: large tiles (amortize ~0.35us/step), TB % 8 == 0
    (or TB == B) to satisfy block-shape rules, and >= 2 grid steps whenever
    possible so the 'parallel' batch axis splits across v7x's two TensorCores.
    Never rejects a batch size."""
    divs = [tb for tb in (64, 56, 48, 40, 32, 24, 16, 8) if B % tb == 0]
    for tb in divs:
        if B // tb >= 2:
            return tb
    return divs[0] if divs else B


@jax.jit
def model_wrapper_forward(x_nchw, params):
    """Pallas implementation of ModelWrapperForDDP.forward (= module._forward(x, True))."""
    B = x_nchw.shape[0]
    TB = _pick_tb(B)
    nb = B // TB

    # NCHW (PyTorch) -> lane-dense y-padded rows [B, H+2, W*C_IN].  One fused
    # transpose+pad+reshape copy of a tiny tensor; x-padding lives in the band.
    x_nhwc = jnp.transpose(x_nchw, (0, 2, 3, 1)).astype(jnp.float32)
    xp = jnp.pad(x_nhwc, ((0, 0), (1, 1), (0, 0), (0, 0))).reshape(B, H + 2, LANES_IN)

    wband, b1row, whead, bhead, wfc_hw, bfc = _pack_weights(params)

    def full(shape):
        return pl.BlockSpec(shape, lambda i: (0,) * len(shape))

    flops = (2 * KH * B * H * LANES_IN * LANES_H        # banded body conv
             + 2 * B * H * LANES_H * LANES_HEAD         # fused 1x1 heads
             + 4 * B * H * W)                           # value spatial FC (VPU)
    bytes_accessed = 4 * (xp.size + wband.size + b1row.size + whead.size
                          + bhead.size + wfc_hw.size + bfc.size
                          + B * H * C_POL * W + B)

    pol_raw, value = pl.pallas_call(
        _net_kernel,
        out_shape=(
            jax.ShapeDtypeStruct((B * H, C_POL * W), jnp.float32),   # rows (b,h), cols (cp,w)
            jax.ShapeDtypeStruct((B, 1), jnp.float32),
        ),
        grid=(nb,),
        in_specs=[
            pl.BlockSpec((TB, H + 2, LANES_IN), lambda i: (i, 0, 0)),
            full((KH, LANES_IN, LANES_H)),     # banded conv weights
            full((1, LANES_H)),                # body bias row
            full((LANES_H, LANES_HEAD)),       # fused banded head weights
            full((1, LANES_HEAD)),             # fused head bias row
            full((H, W)),                      # value FC weight as (h, w) map
            full((1, 1)),                      # value FC bias
        ],
        out_specs=(
            pl.BlockSpec((TB * H, C_POL * W), lambda i: (i, 0)),
            pl.BlockSpec((TB, 1), lambda i: (i, 0)),
        ),
        compiler_params=pltpu.CompilerParams(
            dimension_semantics=("parallel",)),          # splits over v7x's 2 TCs
        cost_estimate=pl.CostEstimate(flops=flops, transcendentals=B,
                                      bytes_accessed=bytes_accessed),
    )(xp, wband, b1row, whead, bhead, wfc_hw, bfc)

    # policy rows are [(b,h), (cp,w)] -> PyTorch flatten order (b, cp*H*W + h*W + w)
    # (tiny tensor; this reorder is negligible next to the kernel's traffic)
    pol = pol_raw.reshape(B, H, C_POL, W).transpose(0, 2, 1, 3).reshape(B, C_POL * H * W)
    return value, pol


def reference_forward(x_nchw, params):
    """Pure-JAX reference (lax.conv) reproducing the PyTorch semantics."""
    B = x_nchw.shape[0]
    x = jnp.transpose(x_nchw, (0, 2, 3, 1)).astype(jnp.float32)     # NHWC
    dn = ("NHWC", "HWIO", "NHWC")
    h = lax.conv_general_dilated(x, params["w1"], (1, 1), "SAME", dimension_numbers=dn)
    h = jnp.maximum(h + params["b1"], 0.0)
    pol = lax.conv_general_dilated(
        h, params["wp"].reshape(1, 1, C_BODY, C_POL), (1, 1), "SAME", dimension_numbers=dn
    ) + params["bp"]
    pol = pol.transpose(0, 3, 1, 2).reshape(B, C_POL * H * W)
    vh = lax.conv_general_dilated(
        h, params["wv"].reshape(1, 1, C_BODY, 1), (1, 1), "SAME", dimension_numbers=dn
    ) + params["bv"]
    vh = jnp.maximum(vh, 0.0).reshape(B, H * W)
    v = jnp.tanh(vh @ params["wfc"] + params["bfc"])
    return v, pol


def init_params(key):
    ks = jax.random.split(key, 8)
    s = 0.1
    return {
        "w1": s * jax.random.normal(ks[0], (KH, KW, C_IN, C_BODY), jnp.float32),
        "b1": s * jax.random.normal(ks[1], (C_BODY,), jnp.float32),
        "wp": s * jax.random.normal(ks[2], (C_BODY, C_POL), jnp.float32),
        "bp": s * jax.random.normal(ks[3], (C_POL,), jnp.float32),
        "wv": s * jax.random.normal(ks[4], (C_BODY, 1), jnp.float32),
        "bv": s * jax.random.normal(ks[5], (1,), jnp.float32),
        "wfc": s * jax.random.normal(ks[6], (H * W, 1), jnp.float32),
        "bfc": s * jax.random.normal(ks[7], (1,), jnp.float32),
    }


if __name__ == "__main__":
    key = jax.random.PRNGKey(0)
    kx, kp, kx2 = jax.random.split(key, 3)
    params = init_params(kp)

    # module-scale example (batch=2) -> single grid step
    x = jax.random.normal(kx, (2, C_IN, H, W), jnp.float32)          # NCHW input
    value, pol_logit = model_wrapper_forward(x, params)
    jax.block_until_ready((value, pol_logit))
    v_ref, p_ref = reference_forward(x, params)
    assert jnp.allclose(value, v_ref, atol=2e-2, rtol=2e-2)
    assert jnp.allclose(pol_logit, p_ref, atol=2e-2, rtol=2e-2)

    # larger batch -> exercises the tiled, megacore-parallel grid (2 steps of 32 boards)
    x_big = jax.random.normal(kx2, (64, C_IN, H, W), jnp.float32)
    value_b, pol_b = model_wrapper_forward(x_big, params)
    jax.block_until_ready((value_b, pol_b))
    v_ref_b, p_ref_b = reference_forward(x_big, params)
    assert jnp.allclose(value_b, v_ref_b, atol=2e-2, rtol=2e-2)
    assert jnp.allclose(pol_b, p_ref_b, atol=2e-2, rtol=2e-2)

    print("KERNEL_OK")
</pallas_src>

<mosaic_0001>
module attributes {stable_mosaic.version = 11 : i64} {
  func.func @_net_kernel(%arg0: i32, %arg1: memref<2x18x64xf32, #tpu.memory_space<vmem>>, %arg2: memref<3x64x512xf32, #tpu.memory_space<vmem>>, %arg3: memref<1x512xf32, #tpu.memory_space<vmem>>, %arg4: memref<512x48xf32, #tpu.memory_space<vmem>>, %arg5: memref<1x48xf32, #tpu.memory_space<vmem>>, %arg6: memref<16x16xf32, #tpu.memory_space<vmem>>, %arg7: memref<1x1xf32, #tpu.memory_space<vmem>>, %arg8: memref<32x32xf32, #tpu.memory_space<vmem>>, %arg9: memref<2x1xf32, #tpu.memory_space<vmem>>) attributes {dimension_semantics = [#tpu.dimension_semantics<parallel>], iteration_bounds = array<i64: 1>, scalar_prefetch = 0 : i64, scratch_operands = 0 : i64, tpu.core_type = #tpu.core_type<tc>, window_params = [{transform_indices = @transform_0, window_bounds = array<i64: 2, 18, 64>}, {pipeline_mode = #tpu.pipeline_mode<synchronous>, transform_indices = @transform_1, window_bounds = array<i64: 3, 64, 512>}, {pipeline_mode = #tpu.pipeline_mode<synchronous>, transform_indices = @transform_2, window_bounds = array<i64: 1, 512>}, {pipeline_mode = #tpu.pipeline_mode<synchronous>, transform_indices = @transform_3, window_bounds = array<i64: 512, 48>}, {pipeline_mode = #tpu.pipeline_mode<synchronous>, transform_indices = @transform_4, window_bounds = array<i64: 1, 48>}, {pipeline_mode = #tpu.pipeline_mode<synchronous>, transform_indices = @transform_5, window_bounds = array<i64: 16, 16>}, {pipeline_mode = #tpu.pipeline_mode<synchronous>, transform_indices = @transform_6, window_bounds = array<i64: 1, 1>}, {transform_indices = @transform_7, window_bounds = array<i64: 32, 32>}, {transform_indices = @transform_8, window_bounds = array<i64: 2, 1>}]} {
    %c0 = arith.constant 0 : index
    %c0_0 = arith.constant 0 : index
    %c0_1 = arith.constant 0 : index
    %0 = vector.load %arg1[%c0, %c0_0, %c0_1] : memref<2x18x64xf32, #tpu.memory_space<vmem>>, vector<2x18x64xf32>
    %1 = vector.extract_strided_slice %0 {offsets = [0, 0, 0], sizes = [2, 16, 64], strides = [1, 1, 1]} : vector<2x18x64xf32> to vector<2x16x64xf32>
    %2 = vector.shape_cast %1 : vector<2x16x64xf32> to vector<32x64xf32>
    %c0_2 = arith.constant 0 : index
    %c0_3 = arith.constant 0 : index
    %c0_4 = arith.constant 0 : index
    %3 = vector.load %arg2[%c0_2, %c0_3, %c0_4] : memref<3x64x512xf32, #tpu.memory_space<vmem>>, vector<1x64x512xf32>
    %4 = vector.shape_cast %3 : vector<1x64x512xf32> to vector<64x512xf32>
    %cst = arith.constant dense<0.000000e+00> : vector<32x512xf32>
    %5 = tpu.matmul %2, %4, %cst {dimension_numbers = #tpu.dot_dimension_numbers<[1], [0], [0], [1], [0, 0, 1, 1], [], []>} : vector<32x64xf32>, vector<64x512xf32>, vector<32x512xf32> -> vector<32x512xf32>
    %6 = vector.extract_strided_slice %0 {offsets = [0, 1, 0], sizes = [2, 16, 64], strides = [1, 1, 1]} : vector<2x18x64xf32> to vector<2x16x64xf32>
    %7 = vector.shape_cast %6 : vector<2x16x64xf32> to vector<32x64xf32>
    %c1 = arith.constant 1 : index
    %c0_5 = arith.constant 0 : index
    %c0_6 = arith.constant 0 : index
    %8 = vector.load %arg2[%c1, %c0_5, %c0_6] : memref<3x64x512xf32, #tpu.memory_space<vmem>>, vector<1x64x512xf32>
    %9 = vector.shape_cast %8 : vector<1x64x512xf32> to vector<64x512xf32>
    %cst_7 = arith.constant dense<0.000000e+00> : vector<32x512xf32>
    %10 = tpu.matmul %7, %9, %cst_7 {dimension_numbers = #tpu.dot_dimension_numbers<[1], [0], [0], [1], [0, 0, 1, 1], [], []>} : vector<32x64xf32>, vector<64x512xf32>, vector<32x512xf32> -> vector<32x512xf32>
    %11 = arith.addf %5, %10 : vector<32x512xf32>
    %12 = vector.extract_strided_slice %0 {offsets = [0, 2, 0], sizes = [2, 16, 64], strides = [1, 1, 1]} : vector<2x18x64xf32> to vector<2x16x64xf32>
    %13 = vector.shape_cast %12 : vector<2x16x64xf32> to vector<32x64xf32>
    %c2 = arith.constant 2 : index
    %c0_8 = arith.constant 0 : index
    %c0_9 = arith.constant 0 : index
    %14 = vector.load %arg2[%c2, %c0_8, %c0_9] : memref<3x64x512xf32, #tpu.memory_space<vmem>>, vector<1x64x512xf32>
    %15 = vector.shape_cast %14 : vector<1x64x512xf32> to vector<64x512xf32>
    %cst_10 = arith.constant dense<0.000000e+00> : vector<32x512xf32>
    %16 = tpu.matmul %13, %15, %cst_10 {dimension_numbers = #tpu.dot_dimension_numbers<[1], [0], [0], [1], [0, 0, 1, 1], [], []>} : vector<32x64xf32>, vector<64x512xf32>, vector<32x512xf32> -> vector<32x512xf32>
    %17 = arith.addf %11, %16 : vector<32x512xf32>
    %c0_11 = arith.constant 0 : index
    %c0_12 = arith.constant 0 : index
    %18 = vector.load %arg3[%c0_11, %c0_12] : memref<1x512xf32, #tpu.memory_space<vmem>>, vector<1x512xf32>
    %19 = vector.broadcast %18 : vector<1x512xf32> to vector<32x512xf32>
    %20 = arith.addf %17, %19 : vector<32x512xf32>
    %cst_13 = arith.constant 0.000000e+00 : f32
    %21 = vector.broadcast %cst_13 : f32 to vector<32x512xf32>
    %22 = arith.maximumf %20, %21 : vector<32x512xf32>
    %c0_14 = arith.constant 0 : index
    %c0_15 = arith.constant 0 : index
    %23 = vector.load %arg4[%c0_14, %c0_15] : memref<512x48xf32, #tpu.memory_space<vmem>>, vector<512x48xf32>
    %cst_16 = arith.constant dense<0.000000e+00> : vector<32x48xf32>
    %24 = tpu.matmul %22, %23, %cst_16 {dimension_numbers = #tpu.dot_dimension_numbers<[1], [0], [0], [1], [0, 0, 1, 1], [], []>} : vector<32x512xf32>, vector<512x48xf32>, vector<32x48xf32> -> vector<32x48xf32>
    %c0_17 = arith.constant 0 : index
    %c0_18 = arith.constant 0 : index
    %25 = vector.load %arg5[%c0_17, %c0_18] : memref<1x48xf32, #tpu.memory_space<vmem>>, vector<1x48xf32>
    %26 = vector.broadcast %25 : vector<1x48xf32> to vector<32x48xf32>
    %27 = arith.addf %24, %26 : vector<32x48xf32>
    %28 = vector.extract_strided_slice %27 {offsets = [0, 0], sizes = [32, 32], strides = [1, 1]} : vector<32x48xf32> to vector<32x32xf32>
    %c0_19 = arith.constant 0 : index
    %c0_20 = arith.constant 0 : index
    %29 = vector.load %arg8[%c0_19, %c0_20] : memref<32x32xf32, #tpu.memory_space<vmem>>, vector<32x32xf32>
    tpu.vector_store %arg8[%c0_19, %c0_20], %28 {strides = array<i32>} : memref<32x32xf32, #tpu.memory_space<vmem>>, vector<32x32xf32>,
    %30 = vector.extract_strided_slice %27 {offsets = [0, 32], sizes = [32, 16], strides = [1, 1]} : vector<32x48xf32> to vector<32x16xf32>
    %cst_21 = arith.constant 0.000000e+00 : f32
    %31 = vector.broadcast %cst_21 : f32 to vector<32x16xf32>
    %32 = arith.maximumf %30, %31 : vector<32x16xf32>
    %33 = vector.shape_cast %32 : vector<32x16xf32> to vector<2x16x16xf32>
    %c0_22 = arith.constant 0 : index
    %c0_23 = arith.constant 0 : index
    %34 = vector.load %arg6[%c0_22, %c0_23] : memref<16x16xf32, #tpu.memory_space<vmem>>, vector<16x16xf32>
    %35 = vector.shape_cast %34 : vector<16x16xf32> to vector<1x16x16xf32>
    %36 = vector.broadcast %35 : vector<1x16x16xf32> to vector<2x16x16xf32>
    %37 = arith.mulf %33, %36 : vector<2x16x16xf32>
    %cst_24 = arith.constant dense<0.000000e+00> : vector<2x16xf32>
    %38 = vector.multi_reduction <add>, %37, %cst_24 [2] : vector<2x16x16xf32> to vector<2x16xf32>
    %cst_25 = arith.constant dense<0.000000e+00> : vector<2xf32>
    %39 = vector.multi_reduction <add>, %38, %cst_25 [1] : vector<2x16xf32> to vector<2xf32>
    %40 = vector.shape_cast %39 : vector<2xf32> to vector<2x1xf32>
    %c0_26 = arith.constant 0 : index
    %c0_27 = arith.constant 0 : index
    %41 = vector.load %arg7[%c0_26, %c0_27] : memref<1x1xf32, #tpu.memory_space<vmem>>, vector<1x1xf32>
    %42 = vector.extract %41[0, 0] : f32 from vector<1x1xf32>
    %43 = vector.broadcast %42 : f32 to vector<2x1xf32>
    %44 = arith.addf %40, %43 : vector<2x1xf32>
    %45 = math.tanh %44 : vector<2x1xf32>
    %c0_28 = arith.constant 0 : index
    %c0_29 = arith.constant 0 : index
    %46 = vector.load %arg9[%c0_28, %c0_29] : memref<2x1xf32, #tpu.memory_space<vmem>>, vector<2x1xf32>
    tpu.vector_store %arg9[%c0_28, %c0_29], %45 {strides = array<i32>} : memref<2x1xf32, #tpu.memory_space<vmem>>, vector<2x1xf32>,
    return
  }
  func.func @transform_0(%arg0: i32) -> (i32, i32, i32) {
    %c0_i32 = arith.constant 0 : i32
    %c0_i32_0 = arith.constant 0 : i32
    %c0_i32_1 = arith.constant 0 : i32
    return %arg0, %c0_i32, %c0_i32_0 : i32, i32, i32
  }
  func.func @transform_1(%arg0: i32) -> (i32, i32, i32) {
    %c0_i32 = arith.constant 0 : i32
    %c0_i32_0 = arith.constant 0 : i32
    %c0_i32_1 = arith.constant 0 : i32
    %c0_i32_2 = arith.constant 0 : i32
    return %c0_i32, %c0_i32_0, %c0_i32_1 : i32, i32, i32
  }
  func.func @transform_2(%arg0: i32) -> (i32, i32) {
    %c0_i32 = arith.constant 0 : i32
    %c0_i32_0 = arith.constant 0 : i32
    %c0_i32_1 = arith.constant 0 : i32
    return %c0_i32, %c0_i32_0 : i32, i32
  }
  func.func @transform_3(%arg0: i32) -> (i32, i32) {
    %c0_i32 = arith.constant 0 : i32
    %c0_i32_0 = arith.constant 0 : i32
    %c0_i32_1 = arith.constant 0 : i32
    return %c0_i32, %c0_i32_0 : i32, i32
  }
  func.func @transform_4(%arg0: i32) -> (i32, i32) {
    %c0_i32 = arith.constant 0 : i32
    %c0_i32_0 = arith.constant 0 : i32
    %c0_i32_1 = arith.constant 0 : i32
    return %c0_i32, %c0_i32_0 : i32, i32
  }
  func.func @transform_5(%arg0: i32) -> (i32, i32) {
    %c0_i32 = arith.constant 0 : i32
    %c0_i32_0 = arith.constant 0 : i32
    %c0_i32_1 = arith.constant 0 : i32
    return %c0_i32, %c0_i32_0 : i32, i32
  }
  func.func @transform_6(%arg0: i32) -> (i32, i32) {
    %c0_i32 = arith.constant 0 : i32
    %c0_i32_0 = arith.constant 0 : i32
    %c0_i32_1 = arith.constant 0 : i32
    return %c0_i32, %c0_i32_0 : i32, i32
  }
  func.func @transform_7(%arg0: i32) -> (i32, i32) {
    %c0_i32 = arith.constant 0 : i32
    %c0_i32_0 = arith.constant 0 : i32
    return %arg0, %c0_i32 : i32, i32
  }
  func.func @transform_8(%arg0: i32) -> (i32, i32) {
    %c0_i32 = arith.constant 0 : i32
    %c0_i32_0 = arith.constant 0 : i32
    return %arg0, %c0_i32 : i32, i32
  }
}

</mosaic_0001>

<llo_original>
// kernel: tile.9
$region0: #{tile.9}
  %s0 = inlined_call_operand.vmem [shape: f32[16,32], index: 0, kind: input, shape index: {}]
  %s1 = inlined_call_operand.vmem [shape: f32[1,512], index: 1, kind: output, shape index: {}]
  $region1: #{tile.9} parent=0
    #allocation0 [shape = 'u8[16384]{0}', space=vmem, size = 0x4000, scoped, tag = 'scoped mem for output reshape']
    %v2 = vld [vmem:[%s0] ss:$4 sm:$0xf]
    %vm3 = vcmask 261120
    %4 = vst.msk [vmem:[#allocation0] ss:$8 sm:$0xf] %vm3, %v2
    %s5 = scalar_lea.vmem %s0, 3
    %v6 = vld [vmem:[%s5] ss:$4 sm:$0xf]
    %7 = vrot.lane.b32.xlu0 %v6, 96
    %v8 = vpop.permute.xlu0 %7
    %vm9 = vcmask 1048320
    %10 = vst.msk [vmem:[#allocation0] ss:$8 sm:$0xf] %vm9, %v8
    %s11 = scalar_lea.vmem %s0, 2
    %v12 = vld [vmem:[%s11] ss:$4 sm:$0xf]
    %13 = vrot.lane.b32.xlu0 %v12, 64
    %v14 = vpop.permute.xlu0 %13
    %vm15 = vcmask 785920
    %16 = vst.msk [vmem:[#allocation0] ss:$8 sm:$0xf] %vm15, %v14
    %s17 = scalar_lea.vmem %s0, 1
    %v18 = vld [vmem:[%s17] ss:$4 sm:$0xf]
    %19 = vrot.lane.b32.xlu0 %v18, 32
    %v20 = vpop.permute.xlu0 %19
    %vm21 = vcmask 523520
    %22 = vst.msk [vmem:[#allocation0] ss:$8 sm:$0xf] %vm21, %v20
    %s24 = sshllo.u32 0, 1
    %v26 = vld [vmem:[#allocation0] sm:%s24]
    %s27 = sshllo.u32 0, 1
    %28 = vst [vmem:[%s1] sm:%s27] %v26
    %s29 = scalar_lea.vmem [#allocation0], 8
    %v30 = vld [vmem:[%s29] sm:%s24]
    %s31 = sshllo.u32 0, 1
    %s32 = scalar_lea.vmem %s1, 1
    %33 = vst [vmem:[%s32] sm:%s31] %v30
    %s34 = scalar_lea.vmem [#allocation0], 16
    %v35 = vld [vmem:[%s34] sm:%s24]
    %s36 = sshllo.u32 0, 1
    %s37 = smul.addr 1, 2
    %s38 = scalar_lea.vmem %s1, %s37
    %39 = vst [vmem:[%s38] sm:%s36] %v35
    %s40 = scalar_lea.vmem [#allocation0], 24
    %v41 = vld [vmem:[%s40] sm:%s24]
    %s42 = sshllo.u32 0, 1
    %s43 = smul.addr 1, 3
    %s44 = scalar_lea.vmem %s1, %s43
    %45 = vst [vmem:[%s44] sm:%s42] %v41

// kernel: model_wrapper_forward.1
$region0: #{model_wrapper_forward.1}
  #allocation0 [shape = 'u32[]', space=smem, size = 0x4, offset = 0x4, fixed_abs, tag = 'smem constant byte address 0x4 - core index']
  #allocation1 [shape = 'u32[144,128]{1,0:T(1,128)}', space=vmem, size = 0x12000, scoped, tag = 'internal scratch']
  #allocation2 [shape = 'f32[1,1]{1,0:T(1,128)S(1)}', space=vmem, size = 0x200, scoped, tag = 'scoped memory for model_wrapper_forward.1']
  %s0 = inlined_call_operand.vmem [shape: f32[2,18,64], index: 0, kind: input, shape index: {}]
  %s1 = inlined_call_operand.vmem [shape: f32[3,64,512], index: 1, kind: input, shape index: {}]
  %s2 = inlined_call_operand.vmem [shape: f32[1,512], index: 2, kind: input, shape index: {}]
  %s3 = inlined_call_operand.vmem [shape: f32[512,48], index: 3, kind: input, shape index: {}]
  %s4 = inlined_call_operand.vmem [shape: f32[1,48], index: 4, kind: input, shape index: {}]
  %s5 = inlined_call_operand.vmem [shape: f32[16,16], index: 5, kind: input, shape index: {}]
  %s6 = inlined_call_operand.<no memory space> [shape: f32[1,1], index: 6, kind: input, shape index: {}]
  %s7 = inlined_call_operand.vmem [shape: f32[32,32], index: 7, kind: output, shape index: {0}]
  %s8 = inlined_call_operand.vmem [shape: f32[2,1], index: 8, kind: output, shape index: {1}]
  %9 = xla_tuple %s7, %s8
  %s10 = sld [smem:[#allocation0]]
  $region46: #{model_wrapper_forward.1} parent=0
    _
  %s12 = ssub.s32 1, %s10
  %s13 = scalar_select 0, %s12, %s10
  %v14 = vstv %s6
  %15 = vst [vmem:[#allocation2] sm:$0x1] %v14
  // Predicated region
  $region2: #{model_wrapper_forward.1} parent=0 // pred_check
    _
  $region3: #{model_wrapper_forward.1} parent=0 // pred_check_branch
    %17 = sbr.rel (0) target = $region5
  $region4: #{model_wrapper_forward.1} parent=0 // pred_region
    _
  $region5: #{model_wrapper_forward.1} parent=0 // pred_fallthru
    _
  // Predicated region
  $region6: #{model_wrapper_forward.1} parent=0 // pred_check
    _
  $region7: #{model_wrapper_forward.1} parent=0 // pred_check_branch
    %19 = sbr.rel (0) target = $region9
  $region8: #{model_wrapper_forward.1} parent=0 // pred_region
    _
  $region9: #{model_wrapper_forward.1} parent=0 // pred_fallthru
    _
  // Predicated region
  $region10: #{model_wrapper_forward.1} parent=0 // pred_check
    _
  $region11: #{model_wrapper_forward.1} parent=0 // pred_check_branch
    %21 = sbr.rel (0) target = $region13
  $region12: #{model_wrapper_forward.1} parent=0 // pred_region
    _
  $region13: #{model_wrapper_forward.1} parent=0 // pred_fallthru
    _
  // Predicated region
  $region14: #{model_wrapper_forward.1} parent=0 // pred_check
    _
  $region15: #{model_wrapper_forward.1} parent=0 // pred_check_branch
    %23 = sbr.rel (0) target = $region17
  $region16: #{model_wrapper_forward.1} parent=0 // pred_region
    _
  $region17: #{model_wrapper_forward.1} parent=0 // pred_fallthru
    _
  // Predicated region
  $region18: #{model_wrapper_forward.1} parent=0 // pred_check
    _
  $region19: #{model_wrapper_forward.1} parent=0 // pred_check_branch
    %25 = sbr.rel (0) target = $region21
  $region20: #{model_wrapper_forward.1} parent=0 // pred_region
    _
  $region21: #{model_wrapper_forward.1} parent=0 // pred_fallthru
    _
  // Predicated region
  $region22: #{model_wrapper_forward.1} parent=0 // pred_check
    _
  $region23: #{model_wrapper_forward.1} parent=0 // pred_check_branch
    %27 = sbr.rel (0) target = $region25
  $region24: #{model_wrapper_forward.1} parent=0 // pred_region
    _
  $region25: #{model_wrapper_forward.1} parent=0 // pred_fallthru
    _
  // Predicated region
  $region26: #{model_wrapper_forward.1} parent=0 // pred_check
    _
  $region27: #{model_wrapper_forward.1} parent=0 // pred_check_branch
    %29 = sbr.rel (0) target = $region29
  $region28: #{model_wrapper_forward.1} parent=0 // pred_region
    _
  $region29: #{model_wrapper_forward.1} parent=0 // pred_fallthru
    _
  %v30 = vld [vmem:[%s0] sm:$0xff]
  %v31 = vld [vmem:[%s0 + $0x8] sm:$0xff]
  %v32 = vld [vmem:[%s0 + $0x10] sm:$0x3]
  %v33 = vld [vmem:[%s0 + $0x18] sm:$0xff]
  %v34 = vld [vmem:[%s0 + $0x20] sm:$0xff]
  %v35 = vld [vmem:[%s0 + $0x28] sm:$0x3]
  %v36 = vld [vmem:[%s1] sm:$0xff]
  %v37 = vld [vmem:[%s1 + $0x8] sm:$0xff]
  %v38 = vld [vmem:[%s1 + $0x10] sm:$0xff]
  %v39 = vld [vmem:[%s1 + $0x18] sm:$0xff]
  %v40 = vld [vmem:[%s1 + $0x20] sm:$0xff]
  %v41 = vld [vmem:[%s1 + $0x28] sm:$0xff]
  %v42 = vld [vmem:[%s1 + $0x30] sm:$0xff]
  %v43 = vld [vmem:[%s1 + $0x38] sm:$0xff]
  %v44 = vld [vmem:[%s1 + $0x40] sm:$0xff]
  %v45 = vld [vmem:[%s1 + $0x48] sm:$0xff]
  %v46 = vld [vmem:[%s1 + $0x50] sm:$0xff]
  %v47 = vld [vmem:[%s1 + $0x58] sm:$0xff]
  %v48 = vld [vmem:[%s1 + $0x60] sm:$0xff]
  %v49 = vld [vmem:[%s1 + $0x68] sm:$0xff]
  %v50 = vld [vmem:[%s1 + $0x70] sm:$0xff]
  %v51 = vld [vmem:[%s1 + $0x78] sm:$0xff]
  %v52 = vld [vmem:[%s1 + $0x80] sm:$0xff]
  %v53 = vld [vmem:[%s1 + $0x88] sm:$0xff]
  %v54 = vld [vmem:[%s1 + $0x90] sm:$0xff]
  %v55 = vld [vmem:[%s1 + $0x98] sm:$0xff]
  %v56 = vld [vmem:[%s1 + $0xa0] sm:$0xff]
  %v57 = vld [vmem:[%s1 + $0xa8] sm:$0xff]
  %v58 = vld [vmem:[%s1 + $0xb0] sm:$0xff]
  %v59 = vld [vmem:[%s1 + $0xb8] sm:$0xff]
  %v60 = vld [vmem:[%s1 + $0xc0] sm:$0xff]
  %v61 = vld [vmem:[%s1 + $0xc8] sm:$0xff]
  %v62 = vld [vmem:[%s1 + $0xd0] sm:$0xff]
  %v63 = vld [vmem:[%s1 + $0xd8] sm:$0xff]
  %v64 = vld [vmem:[%s1 + $0xe0] sm:$0xff]
  %v65 = vld [vmem:[%s1 + $0xe8] sm:$0xff]
  %v66 = vld [vmem:[%s1 + $0xf0] sm:$0xff]
  %v67 = vld [vmem:[%s1 + $0xf8] sm:$0xff]
  %vm74 = vcmask 1046528
  %v75 = vrot.slane %v30, 1
  %v76 = vrot.slane %v31, 1
  %v77 = vsel %vm74, %v75, %v76
  %v78 = vrot.slane %v32, 1
  %v79 = vsel %vm74, %v76, %v78
  %v80 = vrot.slane %v33, 1
  %v81 = vrot.slane %v34, 1
  %v82 = vsel %vm74, %v80, %v81
  %v83 = vrot.slane %v35, 1
  %v84 = vsel %vm74, %v81, %v83
  %s85 = scalar_lea.vmem %s1, 256
  %v86 = vld [vmem:[%s85] sm:$0xff]
  %v87 = vld [vmem:[%s85 + $0x8] sm:$0xff]
  %v88 = vld [vmem:[%s85 + $0x10] sm:$0xff]
  %v89 = vld [vmem:[%s85 + $0x18] sm:$0xff]
  %v90 = vld [vmem:[%s85 + $0x20] sm:$0xff]
  %v91 = vld [vmem:[%s85 + $0x28] sm:$0xff]
  %v92 = vld [vmem:[%s85 + $0x30] sm:$0xff]
  %v93 = vld [vmem:[%s85 + $0x38] sm:$0xff]
  %v94 = vld [vmem:[%s85 + $0x40] sm:$0xff]
  %v95 = vld [vmem:[%s85 + $0x48] sm:$0xff]
  %v96 = vld [vmem:[%s85 + $0x50] sm:$0xff]
  %v97 = vld [vmem:[%s85 + $0x58] sm:$0xff]
  %v98 = vld [vmem:[%s85 + $0x60] sm:$0xff]
  %v99 = vld [vmem:[%s85 + $0x68] sm:$0xff]
  %v100 = vld [vmem:[%s85 + $0x70] sm:$0xff]
  %v101 = vld [vmem:[%s85 + $0x78] sm:$0xff]
  %v102 = vld [vmem:[%s85 + $0x80] sm:$0xff]
  %v103 = vld [vmem:[%s85 + $0x88] sm:$0xff]
  %v104 = vld [vmem:[%s85 + $0x90] sm:$0xff]
  %v105 = vld [vmem:[%s85 + $0x98] sm:$0xff]
  %v106 = vld [vmem:[%s85 + $0xa0] sm:$0xff]
  %v107 = vld [vmem:[%s85 + $0xa8] sm:$0xff]
  %v108 = vld [vmem:[%s85 + $0xb0] sm:$0xff]
  %v109 = vld [vmem:[%s85 + $0xb8] sm:$0xff]
  %v110 = vld [vmem:[%s85 + $0xc0] sm:$0xff]
  %v111 = vld [vmem:[%s85 + $0xc8] sm:$0xff]
  %v112 = vld [vmem:[%s85 + $0xd0] sm:$0xff]
  %v113 = vld [vmem:[%s85 + $0xd8] sm:$0xff]
  %v114 = vld [vmem:[%s85 + $0xe0] sm:$0xff]
  %v115 = vld [vmem:[%s85 + $0xe8] sm:$0xff]
  %v116 = vld [vmem:[%s85 + $0xf0] sm:$0xff]
  %v117 = vld [vmem:[%s85 + $0xf8] sm:$0xff]
  %vm118 = vcmask 523264
  %v119 = vsel %vm118, %v77, 0
  %v121 = vsel %vm118, %v79, 0
  %v123 = vsel %vm118, %v82, 0
  %v125 = vsel %vm118, %v84, 0
  %127 = vmatprep.subr.mxu0 %v87
  %128 = vmatpush1.msra.mxu0 %v86
  %129 = vmatprep.subr.mxu0 %v91
  %130 = vmatpush1.msra.mxu0 %v90
  %131 = vmatprep.subr.mxu0 %v95
  %132 = vmatpush1.msra.mxu0 %v94
  %133 = vmatprep.subr.mxu0 %v99
  %134 = vmatpush1.msra.mxu0 %v98
  %135 = vmatprep.subr.mxu0 %v103
  %136 = vmatpush1.msra.mxu0 %v102
  %137 = vmatprep.subr.mxu0 %v107
  %138 = vmatpush1.msra.mxu0 %v106
  %139 = vmatprep.subr.mxu0 %v111
  %140 = vmatpush1.msra.mxu0 %v110
  %141 = vmatprep.subr.mxu0 %v115
  %142 = vmatpush1.msra.mxu0 %v114
  %143 = vmatprep.subr.mxu0 0.0
  %144 = vmatpush1.msra.mxu0 0.0
  %145 = vmatprep.subr.mxu0 0.0
  %146 = vmatpush1.msra.mxu0 0.0
  %147 = vmatprep.subr.mxu0 0.0
  %148 = vmatpush1.msra.mxu0 0.0
  %149 = vmatprep.subr.mxu0 0.0
  %150 = vmatpush1.msra.mxu0 0.0
  %151 = vmatprep.subr.mxu0 0.0
  %152 = vmatpush1.msra.mxu0 0.0
  %153 = vmatprep.subr.mxu0 0.0
  %154 = vmatpush1.msra.mxu0 0.0
  %155 = vmatprep.subr.mxu0 0.0
  %156 = vmatpush1.msra.mxu0 0.0
  %157 = vmatprep.subr.mxu0 0.0
  %158 = vmatpush1.msra.mxu0 0.0
  %159 = vmatprep.subr.mxu0 0.0
  %160 = vmatpush1.msra.mxu0 0.0
  %161 = vmatprep.subr.mxu0 0.0
  %162 = vmatpush1.msra.mxu0 0.0
  %163 = vmatprep.subr.mxu0 0.0
  %164 = vmatpush1.msra.mxu0 0.0
  %165 = vmatprep.subr.mxu0 0.0
  %166 = vmatpush1.msra.mxu0 0.0
  %167 = vmatprep.subr.mxu0 0.0
  %168 = vmatpush1.msra.mxu0 0.0
  %169 = vmatprep.subr.mxu0 0.0
  %170 = vmatpush1.msra.mxu0 0.0
  %171 = vmatprep.subr.mxu0 0.0
  %172 = vmatpush1.msra.mxu0 0.0
  %173 = vmatprep.subr.mxu0 0.0
  %174 = vmatpush1.msra.mxu0 0.0
  %175 = vmatprep.subr.mxu0 0.0
  %176 = vmatpush1.msra.mxu0 0.0
  %177 = vmatprep.subr.mxu0 0.0
  %178 = vmatpush1.msra.mxu0 0.0
  %179 = vmatprep.subr.mxu0 0.0
  %180 = vmatpush1.msra.mxu0 0.0
  %181 = vmatprep.subr.mxu0 0.0
  %182 = vmatpush1.msra.mxu0 0.0
  %183 = vmatprep.subr.mxu0 0.0
  %184 = vmatpush1.msra.mxu0 0.0
  %185 = vmatprep.subr.mxu0 0.0
  %186 = vmatpush1.msra.mxu0 0.0
  %187 = vmatprep.subr.mxu0 0.0
  %188 = vmatpush1.msra.mxu0 0.0
  %189 = vmatprep.subr.mxu0 0.0
  %190 = vmatpush1.msra.mxu0 0.0
  %191 = vmatprep.mubr.f32.mxu0 0.0
  %192 = vmatmul.mubr.f32.gmra.mrb[0].mxu0 %v119
  %v193 = vpop.f32.mrb[0].mxu0
  %v194 = vadd.f32 0.0, %v193
  %v195 = vpop.f32.mrb[0].mxu0
  %v196 = vadd.f32 0.0, %v195
  %197 = vmatprep.mubr.f32.mxu0 0.0
  %198 = vmatmul.mubr.f32.gmra.mrb[0].mxu0 %v121
  %v199 = vpop.f32.mrb[0].mxu0
  %v200 = vadd.f32 0.0, %v199
  %v201 = vpop.f32.mrb[0].mxu0
  %v202 = vadd.f32 0.0, %v201
  %203 = vmatprep.mubr.f32.mxu0 0.0
  %204 = vmatmul.mubr.f32.gmra.mrb[0].mxu0 %v123
  %v205 = vpop.f32.mrb[0].mxu0
  %v206 = vadd.f32 0.0, %v205
  %v207 = vpop.f32.mrb[0].mxu0
  %v208 = vadd.f32 0.0, %v207
  %209 = vmatprep.mubr.f32.mxu0 0.0
  %210 = vmatmul.mubr.f32.gmra.mrb[0].mxu0 %v125
  %v211 = vpop.f32.mrb[0].mxu0
  %v212 = vadd.f32 0.0, %v211
  %v213 = vpop.f32.mrb[0].mxu0
  %v214 = vadd.f32 0.0, %v213
  %215 = vdwg.mxu0
  %216 = vmatprep.subr.mxu0 %v89
  %217 = vmatpush1.msra.mxu0 %v88
  %218 = vmatprep.subr.mxu0 %v93
  %219 = vmatpush1.msra.mxu0 %v92
  %220 = vmatprep.subr.mxu0 %v97
  %221 = vmatpush1.msra.mxu0 %v96
  %222 = vmatprep.subr.mxu0 %v101
  %223 = vmatpush1.msra.mxu0 %v100
  %224 = vmatprep.subr.mxu0 %v105
  %225 = vmatpush1.msra.mxu0 %v104
  %226 = vmatprep.subr.mxu0 %v109
  %227 = vmatpush1.msra.mxu0 %v108
  %228 = vmatprep.subr.mxu0 %v113
  %229 = vmatpush1.msra.mxu0 %v112
  %230 = vmatprep.subr.mxu0 %v117
  %231 = vmatpush1.msra.mxu0 %v116
  %232 = vmatprep.subr.mxu0 0.0
  %233 = vmatpush1.msra.mxu0 0.0
  %234 = vmatprep.subr.mxu0 0.0
  %235 = vmatpush1.msra.mxu0 0.0
  %236 = vmatprep.subr.mxu0 0.0
  %237 = vmatpush1.msra.mxu0 0.0
  %238 = vmatprep.subr.mxu0 0.0
  %239 = vmatpush1.msra.mxu0 0.0
  %240 = vmatprep.subr.mxu0 0.0
  %241 = vmatpush1.msra.mxu0 0.0
  %242 = vmatprep.subr.mxu0 0.0
  %243 = vmatpush1.msra.mxu0 0.0
  %244 = vmatprep.subr.mxu0 0.0
  %245 = vmatpush1.msra.mxu0 0.0
  %246 = vmatprep.subr.mxu0 0.0
  %247 = vmatpush1.msra.mxu0 0.0
  %248 = vmatprep.subr.mxu0 0.0
  %249 = vmatpush1.msra.mxu0 0.0
  %250 = vmatprep.subr.mxu0 0.0
  %251 = vmatpush1.msra.mxu0 0.0
  %252 = vmatprep.subr.mxu0 0.0
  %253 = vmatpush1.msra.mxu0 0.0
  %254 = vmatprep.subr.mxu0 0.0
  %255 = vmatpush1.msra.mxu0 0.0
  %256 = vmatprep.subr.mxu0 0.0
  %257 = vmatpush1.msra.mxu0 0.0
  %258 = vmatprep.subr.mxu0 0.0
  %259 = vmatpush1.msra.mxu0 0.0
  %260 = vmatprep.subr.mxu0 0.0
  %261 = vmatpush1.msra.mxu0 0.0
  %262 = vmatprep.subr.mxu0 0.0
  %263 = vmatpush1.msra.mxu0 0.0
  %264 = vmatprep.subr.mxu0 0.0
  %265 = vmatpush1.msra.mxu0 0.0
  %266 = vmatprep.subr.mxu0 0.0
  %267 = vmatpush1.msra.mxu0 0.0
  %268 = vmatprep.subr.mxu0 0.0
  %269 = vmatpush1.msra.mxu0 0.0
  %270 = vmatprep.subr.mxu0 0.0
  %271 = vmatpush1.msra.mxu0 0.0
  %272 = vmatprep.subr.mxu0 0.0
  %273 = vmatpush1.msra.mxu0 0.0
  %274 = vmatprep.subr.mxu0 0.0
  %275 = vmatpush1.msra.mxu0 0.0
  %276 = vmatprep.subr.mxu0 0.0
  %277 = vmatpush1.msra.mxu0 0.0
  %278 = vmatprep.subr.mxu0 0.0
  %279 = vmatpush1.msra.mxu0 0.0
  %280 = vmatprep.mubr.f32.mxu0 0.0
  %281 = vmatmul.mubr.f32.gmra.mrb[0].mxu0 %v119
  %v282 = vpop.f32.mrb[0].mxu0
  %v283 = vadd.f32 0.0, %v282
  %v284 = vpop.f32.mrb[0].mxu0
  %v285 = vadd.f32 0.0, %v284
  %286 = vmatprep.mubr.f32.mxu0 0.0
  %287 = vmatmul.mubr.f32.gmra.mrb[0].mxu0 %v121
  %v288 = vpop.f32.mrb[0].mxu0
  %v289 = vadd.f32 0.0, %v288
  %v290 = vpop.f32.mrb[0].mxu0
  %v291 = vadd.f32 0.0, %v290
  %292 = vmatprep.mubr.f32.mxu0 0.0
  %293 = vmatmul.mubr.f32.gmra.mrb[0].mxu0 %v123
  %v294 = vpop.f32.mrb[0].mxu0
  %v295 = vadd.f32 0.0, %v294
  %v296 = vpop.f32.mrb[0].mxu0
  %v297 = vadd.f32 0.0, %v296
  %298 = vmatprep.mubr.f32.mxu0 0.0
  %299 = vmatmul.mubr.f32.gmra.mrb[0].mxu0 %v125
  %v300 = vpop.f32.mrb[0].mxu0
  %v301 = vadd.f32 0.0, %v300
  %v302 = vpop.f32.mrb[0].mxu0
  %v303 = vadd.f32 0.0, %v302
  %304 = vdwg.mxu0
  %v305 = vsel %vm118, %v30, 0
  %v307 = vsel %vm118, %v31, 0
  %v309 = vsel %vm118, %v33, 0
  %v311 = vsel %vm118, %v34, 0
  %313 = vmatprep.subr.mxu0 %v37
  %314 = vmatpush1.msra.mxu0 %v36
  %315 = vmatprep.subr.mxu0 %v41
  %316 = vmatpush1.msra.mxu0 %v40
  %317 = vmatprep.subr.mxu0 %v45
  %318 = vmatpush1.msra.mxu0 %v44
  %319 = vmatprep.subr.mxu0 %v49
  %320 = vmatpush1.msra.mxu0 %v48
  %321 = vmatprep.subr.mxu0 %v53
  %322 = vmatpush1.msra.mxu0 %v52
  %323 = vmatprep.subr.mxu0 %v57
  %324 = vmatpush1.msra.mxu0 %v56
  %325 = vmatprep.subr.mxu0 %v61
  %326 = vmatpush1.msra.mxu0 %v60
  %327 = vmatprep.subr.mxu0 %v65
  %328 = vmatpush1.msra.mxu0 %v64
  %329 = vmatprep.subr.mxu0 0.0
  %330 = vmatpush1.msra.mxu0 0.0
  %331 = vmatprep.subr.mxu0 0.0
  %332 = vmatpush1.msra.mxu0 0.0
  %333 = vmatprep.subr.mxu0 0.0
  %334 = vmatpush1.msra.mxu0 0.0
  %335 = vmatprep.subr.mxu0 0.0
  %336 = vmatpush1.msra.mxu0 0.0
  %337 = vmatprep.subr.mxu0 0.0
  %338 = vmatpush1.msra.mxu0 0.0
  %339 = vmatprep.subr.mxu0 0.0
  %340 = vmatpush1.msra.mxu0 0.0
  %341 = vmatprep.subr.mxu0 0.0
  %342 = vmatpush1.msra.mxu0 0.0
  %343 = vmatprep.subr.mxu0 0.0
  %344 = vmatpush1.msra.mxu0 0.0
  %345 = vmatprep.subr.mxu0 0.0
  %346 = vmatpush1.msra.mxu0 0.0
  %347 = vmatprep.subr.mxu0 0.0
  %348 = vmatpush1.msra.mxu0 0.0
  %349 = vmatprep.subr.mxu0 0.0
  %350 = vmatpush1.msra.mxu0 0.0
  %351 = vmatprep.subr.mxu0 0.0
  %352 = vmatpush1.msra.mxu0 0.0
  %353 = vmatprep.subr.mxu0 0.0
  %354 = vmatpush1.msra.mxu0 0.0
  %355 = vmatprep.subr.mxu0 0.0
  %356 = vmatpush1.msra.mxu0 0.0
  %357 = vmatprep.subr.mxu0 0.0
  %358 = vmatpush1.msra.mxu0 0.0
  %359 = vmatprep.subr.mxu0 0.0
  %360 = vmatpush1.msra.mxu0 0.0
  %361 = vmatprep.subr.mxu0 0.0
  %362 = vmatpush1.msra.mxu0 0.0
  %363 = vmatprep.subr.mxu0 0.0
  %364 = vmatpush1.msra.mxu0 0.0
  %365 = vmatprep.subr.mxu0 0.0
  %366 = vmatpush1.msra.mxu0 0.0
  %367 = vmatprep.subr.mxu0 0.0
  %368 = vmatpush1.msra.mxu0 0.0
  %369 = vmatprep.subr.mxu0 0.0
  %370 = vmatpush1.msra.mxu0 0.0
  %371 = vmatprep.subr.mxu0 0.0
  %372 = vmatpush1.msra.mxu0 0.0
  %373 = vmatprep.subr.mxu0 0.0
  %374 = vmatpush1.msra.mxu0 0.0
  %375 = vmatprep.subr.mxu0 0.0
  %376 = vmatpush1.msra.mxu0 0.0
  %377 = vmatprep.mubr.f32.mxu0 0.0
  %378 = vmatmul.mubr.f32.gmra.mrb[0].mxu0 %v305
  %v379 = vpop.f32.mrb[0].mxu0
  %v380 = vadd.f32 %v194, %v379
  %v381 = vpop.f32.mrb[0].mxu0
  %v382 = vadd.f32 %v196, %v381
  %383 = vmatprep.mubr.f32.mxu0 0.0
  %384 = vmatmul.mubr.f32.gmra.mrb[0].mxu0 %v307
  %v385 = vpop.f32.mrb[0].mxu0
  %v386 = vadd.f32 %v200, %v385
  %v387 = vpop.f32.mrb[0].mxu0
  %v388 = vadd.f32 %v202, %v387
  %389 = vmatprep.mubr.f32.mxu0 0.0
  %390 = vmatmul.mubr.f32.gmra.mrb[0].mxu0 %v309
  %v391 = vpop.f32.mrb[0].mxu0
  %v392 = vadd.f32 %v206, %v391
  %v393 = vpop.f32.mrb[0].mxu0
  %v394 = vadd.f32 %v208, %v393
  %395 = vmatprep.mubr.f32.mxu0 0.0
  %396 = vmatmul.mubr.f32.gmra.mrb[0].mxu0 %v311
  %v397 = vpop.f32.mrb[0].mxu0
  %v398 = vadd.f32 %v212, %v397
  %v399 = vpop.f32.mrb[0].mxu0
  %v400 = vadd.f32 %v214, %v399
  %401 = vdwg.mxu0
  %402 = vmatprep.subr.mxu0 %v39
  %403 = vmatpush1.msra.mxu0 %v38
  %404 = vmatprep.subr.mxu0 %v43
  %405 = vmatpush1.msra.mxu0 %v42
  %406 = vmatprep.subr.mxu0 %v47
  %407 = vmatpush1.msra.mxu0 %v46
  %408 = vmatprep.subr.mxu0 %v51
  %409 = vmatpush1.msra.mxu0 %v50
  %410 = vmatprep.subr.mxu0 %v55
  %411 = vmatpush1.msra.mxu0 %v54
  %412 = vmatprep.subr.mxu0 %v59
  %413 = vmatpush1.msra.mxu0 %v58
  %414 = vmatprep.subr.mxu0 %v63
  %415 = vmatpush1.msra.mxu0 %v62
  %416 = vmatprep.subr.mxu0 %v67
  %417 = vmatpush1.msra.mxu0 %v66
  %418 = vmatprep.subr.mxu0 0.0
  %419 = vmatpush1.msra.mxu0 0.0
  %420 = vmatprep.subr.mxu0 0.0
  %421 = vmatpush1.msra.mxu0 0.0
  %422 = vmatprep.subr.mxu0 0.0
  %423 = vmatpush1.msra.mxu0 0.0
  %424 = vmatprep.subr.mxu0 0.0
  %425 = vmatpush1.msra.mxu0 0.0
  %426 = vmatprep.subr.mxu0 0.0
  %427 = vmatpush1.msra.mxu0 0.0
  %428 = vmatprep.subr.mxu0 0.0
  %429 = vmatpush1.msra.mxu0 0.0
  %430 = vmatprep.subr.mxu0 0.0
  %431 = vmatpush1.msra.mxu0 0.0
  %432 = vmatprep.subr.mxu0 0.0
  %433 = vmatpush1.msra.mxu0 0.0
  %434 = vmatprep.subr.mxu0 0.0
  %435 = vmatpush1.msra.mxu0 0.0
  %436 = vmatprep.subr.mxu0 0.0
  %437 = vmatpush1.msra.mxu0 0.0
  %438 = vmatprep.subr.mxu0 0.0
  %439 = vmatpush1.msra.mxu0 0.0
  %440 = vmatprep.subr.mxu0 0.0
  %441 = vmatpush1.msra.mxu0 0.0
  %442 = vmatprep.subr.mxu0 0.0
  %443 = vmatpush1.msra.mxu0 0.0
  %444 = vmatprep.subr.mxu0 0.0
  %445 = vmatpush1.msra.mxu0 0.0
  %446 = vmatprep.subr.mxu0 0.0
  %447 = vmatpush1.msra.mxu0 0.0
  %448 = vmatprep.subr.mxu0 0.0
  %449 = vmatpush1.msra.mxu0 0.0
  %450 = vmatprep.subr.mxu0 0.0
  %451 = vmatpush1.msra.mxu0 0.0
  %452 = vmatprep.subr.mxu0 0.0
  %453 = vmatpush1.msra.mxu0 0.0
  %454 = vmatprep.subr.mxu0 0.0
  %455 = vmatpush1.msra.mxu0 0.0
  %456 = vmatprep.subr.mxu0 0.0
  %457 = vmatpush1.msra.mxu0 0.0
  %458 = vmatprep.subr.mxu0 0.0
  %459 = vmatpush1.msra.mxu0 0.0
  %460 = vmatprep.subr.mxu0 0.0
  %461 = vmatpush1.msra.mxu0 0.0
  %462 = vmatprep.subr.mxu0 0.0
  %463 = vmatpush1.msra.mxu0 0.0
  %464 = vmatprep.subr.mxu0 0.0
  %465 = vmatpush1.msra.mxu0 0.0
  %466 = vmatprep.mubr.f32.mxu0 0.0
  %467 = vmatmul.mubr.f32.gmra.mrb[0].mxu0 %v305
  %v468 = vpop.f32.mrb[0].mxu0
  %v469 = vadd.f32 %v283, %v468
  %v470 = vpop.f32.mrb[0].mxu0
  %v471 = vadd.f32 %v285, %v470
  %472 = vmatprep.mubr.f32.mxu0 0.0
  %473 = vmatmul.mubr.f32.gmra.mrb[0].mxu0 %v307
  %v474 = vpop.f32.mrb[0].mxu0
  %v475 = vadd.f32 %v289, %v474
  %v476 = vpop.f32.mrb[0].mxu0
  %v477 = vadd.f32 %v291, %v476
  %478 = vmatprep.mubr.f32.mxu0 0.0
  %479 = vmatmul.mubr.f32.gmra.mrb[0].mxu0 %v309
  %v480 = vpop.f32.mrb[0].mxu0
  %v481 = vadd.f32 %v295, %v480
  %v482 = vpop.f32.mrb[0].mxu0
  %v483 = vadd.f32 %v297, %v482
  %484 = vmatprep.mubr.f32.mxu0 0.0
  %485 = vmatmul.mubr.f32.gmra.mrb[0].mxu0 %v311
  %v486 = vpop.f32.mrb[0].mxu0
  %v487 = vadd.f32 %v301, %v486
  %v488 = vpop.f32.mrb[0].mxu0
  %v489 = vadd.f32 %v303, %v488
  %490 = vdwg.mxu0
  %vm491 = vcmask 1045504
  %v492 = vrot.slane %v30, 2
  %v493 = vrot.slane %v31, 2
  %v494 = vsel %vm491, %v492, %v493
  %v495 = vrot.slane %v32, 2
  %v496 = vsel %vm491, %v493, %v495
  %v497 = vrot.slane %v33, 2
  %v498 = vrot.slane %v34, 2
  %v499 = vsel %vm491, %v497, %v498
  %v500 = vrot.slane %v35, 2
  %v501 = vsel %vm491, %v498, %v500
  %s502 = scalar_lea.vmem %s1, 512
  %v503 = vld [vmem:[%s502] sm:$0xff]
  %v504 = vld [vmem:[%s502 + $0x8] sm:$0xff]
  %v505 = vld [vmem:[%s502 + $0x10] sm:$0xff]
  %v506 = vld [vmem:[%s502 + $0x18] sm:$0xff]
  %v507 = vld [vmem:[%s502 + $0x20] sm:$0xff]
  %v508 = vld [vmem:[%s502 + $0x28] sm:$0xff]
  %v509 = vld [vmem:[%s502 + $0x30] sm:$0xff]
  %v510 = vld [vmem:[%s502 + $0x38] sm:$0xff]
  %v511 = vld [vmem:[%s502 + $0x40] sm:$0xff]
  %v512 = vld [vmem:[%s502 + $0x48] sm:$0xff]
  %v513 = vld [vmem:[%s502 + $0x50] sm:$0xff]
  %v514 = vld [vmem:[%s502 + $0x58] sm:$0xff]
  %v515 = vld [vmem:[%s502 + $0x60] sm:$0xff]
  %v516 = vld [vmem:[%s502 + $0x68] sm:$0xff]
  %v517 = vld [vmem:[%s502 + $0x70] sm:$0xff]
  %v518 = vld [vmem:[%s502 + $0x78] sm:$0xff]
  %v519 = vld [vmem:[%s502 + $0x80] sm:$0xff]
  %v520 = vld [vmem:[%s502 + $0x88] sm:$0xff]
  %v521 = vld [vmem:[%s502 + $0x90] sm:$0xff]
  %v522 = vld [vmem:[%s502 + $0x98] sm:$0xff]
  %v523 = vld [vmem:[%s502 + $0xa0] sm:$0xff]
  %v524 = vld [vmem:[%s502 + $0xa8] sm:$0xff]
  %v525 = vld [vmem:[%s502 + $0xb0] sm:$0xff]
  %v526 = vld [vmem:[%s502 + $0xb8] sm:$0xff]
  %v527 = vld [vmem:[%s502 + $0xc0] sm:$0xff]
  %v528 = vld [vmem:[%s502 + $0xc8] sm:$0xff]
  %v529 = vld [vmem:[%s502 + $0xd0] sm:$0xff]
  %v530 = vld [vmem:[%s502 + $0xd8] sm:$0xff]
  %v531 = vld [vmem:[%s502 + $0xe0] sm:$0xff]
  %v532 = vld [vmem:[%s502 + $0xe8] sm:$0xff]
  %v533 = vld [vmem:[%s502 + $0xf0] sm:$0xff]
  %v534 = vld [vmem:[%s502 + $0xf8] sm:$0xff]
  %v535 = vsel %vm118, %v494, 0
  %v537 = vsel %vm118, %v496, 0
  %v539 = vsel %vm118, %v499, 0
  %v541 = vsel %vm118, %v501, 0
  %543 = vmatprep.subr.mxu0 %v504
  %544 = vmatpush1.msra.mxu0 %v503
  %545 = vmatprep.subr.mxu0 %v508
  %546 = vmatpush1.msra.mxu0 %v507
  %547 = vmatprep.subr.mxu0 %v512
  %548 = vmatpush1.msra.mxu0 %v511
  %549 = vmatprep.subr.mxu0 %v516
  %550 = vmatpush1.msra.mxu0 %v515
  %551 = vmatprep.subr.mxu0 %v520
  %552 = vmatpush1.msra.mxu0 %v519
  %553 = vmatprep.subr.mxu0 %v524
  %554 = vmatpush1.msra.mxu0 %v523
  %555 = vmatprep.subr.mxu0 %v528
  %556 = vmatpush1.msra.mxu0 %v527
  %557 = vmatprep.subr.mxu0 %v532
  %558 = vmatpush1.msra.mxu0 %v531
  %559 = vmatprep.subr.mxu0 0.0
  %560 = vmatpush1.msra.mxu0 0.0
  %561 = vmatprep.subr.mxu0 0.0
  %562 = vmatpush1.msra.mxu0 0.0
  %563 = vmatprep.subr.mxu0 0.0
  %564 = vmatpush1.msra.mxu0 0.0
  %565 = vmatprep.subr.mxu0 0.0
  %566 = vmatpush1.msra.mxu0 0.0
  %567 = vmatprep.subr.mxu0 0.0
  %568 = vmatpush1.msra.mxu0 0.0
  %569 = vmatprep.subr.mxu0 0.0
  %570 = vmatpush1.msra.mxu0 0.0
  %571 = vmatprep.subr.mxu0 0.0
  %572 = vmatpush1.msra.mxu0 0.0
  %573 = vmatprep.subr.mxu0 0.0
  %574 = vmatpush1.msra.mxu0 0.0
  %575 = vmatprep.subr.mxu0 0.0
  %576 = vmatpush1.msra.mxu0 0.0
  %577 = vmatprep.subr.mxu0 0.0
  %578 = vmatpush1.msra.mxu0 0.0
  %579 = vmatprep.subr.mxu0 0.0
  %580 = vmatpush1.msra.mxu0 0.0
  %581 = vmatprep.subr.mxu0 0.0
  %582 = vmatpush1.msra.mxu0 0.0
  %583 = vmatprep.subr.mxu0 0.0
  %584 = vmatpush1.msra.mxu0 0.0
  %585 = vmatprep.subr.mxu0 0.0
  %586 = vmatpush1.msra.mxu0 0.0
  %587 = vmatprep.subr.mxu0 0.0
  %588 = vmatpush1.msra.mxu0 0.0
  %589 = vmatprep.subr.mxu0 0.0
  %590 = vmatpush1.msra.mxu0 0.0
  %591 = vmatprep.subr.mxu0 0.0
  %592 = vmatpush1.msra.mxu0 0.0
  %593 = vmatprep.subr.mxu0 0.0
  %594 = vmatpush1.msra.mxu0 0.0
  %595 = vmatprep.subr.mxu0 0.0
  %596 = vmatpush1.msra.mxu0 0.0
  %597 = vmatprep.subr.mxu0 0.0
  %598 = vmatpush1.msra.mxu0 0.0
  %599 = vmatprep.subr.mxu0 0.0
  %600 = vmatpush1.msra.mxu0 0.0
  %601 = vmatprep.subr.mxu0 0.0
  %602 = vmatpush1.msra.mxu0 0.0
  %603 = vmatprep.subr.mxu0 0.0
  %604 = vmatpush1.msra.mxu0 0.0
  %605 = vmatprep.subr.mxu0 0.0
  %606 = vmatpush1.msra.mxu0 0.0
  %607 = vmatprep.mubr.f32.mxu0 0.0
  %608 = vmatmul.mubr.f32.gmra.mrb[0].mxu0 %v535
  %v609 = vpop.f32.mrb[0].mxu0
  %v610 = vadd.f32 0.0, %v609
  %v611 = vpop.f32.mrb[0].mxu0
  %v612 = vadd.f32 0.0, %v611
  %613 = vmatprep.mubr.f32.mxu0 0.0
  %614 = vmatmul.mubr.f32.gmra.mrb[0].mxu0 %v537
  %v615 = vpop.f32.mrb[0].mxu0
  %v616 = vadd.f32 0.0, %v615
  %v617 = vpop.f32.mrb[0].mxu0
  %v618 = vadd.f32 0.0, %v617
  %619 = vmatprep.mubr.f32.mxu0 0.0
  %620 = vmatmul.mubr.f32.gmra.mrb[0].mxu0 %v539
  %v621 = vpop.f32.mrb[0].mxu0
  %v622 = vadd.f32 0.0, %v621
  %v623 = vpop.f32.mrb[0].mxu0
  %v624 = vadd.f32 0.0, %v623
  %625 = vmatprep.mubr.f32.mxu0 0.0
  %626 = vmatmul.mubr.f32.gmra.mrb[0].mxu0 %v541
  %v627 = vpop.f32.mrb[0].mxu0
  %v628 = vadd.f32 0.0, %v627
  %v629 = vpop.f32.mrb[0].mxu0
  %v630 = vadd.f32 0.0, %v629
  %631 = vdwg.mxu0
  %632 = vmatprep.subr.mxu0 %v506
  %633 = vmatpush1.msra.mxu0 %v505
  %634 = vmatprep.subr.mxu0 %v510
  %635 = vmatpush1.msra.mxu0 %v509
  %636 = vmatprep.subr.mxu0 %v514
  %637 = vmatpush1.msra.mxu0 %v513
  %638 = vmatprep.subr.mxu0 %v518
  %639 = vmatpush1.msra.mxu0 %v517
  %640 = vmatprep.subr.mxu0 %v522
  %641 = vmatpush1.msra.mxu0 %v521
  %642 = vmatprep.subr.mxu0 %v526
  %643 = vmatpush1.msra.mxu0 %v525
  %644 = vmatprep.subr.mxu0 %v530
  %645 = vmatpush1.msra.mxu0 %v529
  %646 = vmatprep.subr.mxu0 %v534
  %647 = vmatpush1.msra.mxu0 %v533
  %648 = vmatprep.subr.mxu0 0.0
  %649 = vmatpush1.msra.mxu0 0.0
  %650 = vmatprep.subr.mxu0 0.0
  %651 = vmatpush1.msra.mxu0 0.0
  %652 = vmatprep.subr.mxu0 0.0
  %653 = vmatpush1.msra.mxu0 0.0
  %654 = vmatprep.subr.mxu0 0.0
  %655 = vmatpush1.msra.mxu0 0.0
  %656 = vmatprep.subr.mxu0 0.0
  %657 = vmatpush1.msra.mxu0 0.0
  %658 = vmatprep.subr.mxu0 0.0
  %659 = vmatpush1.msra.mxu0 0.0
  %660 = vmatprep.subr.mxu0 0.0
  %661 = vmatpush1.msra.mxu0 0.0
  %662 = vmatprep.subr.mxu0 0.0
  %663 = vmatpush1.msra.mxu0 0.0
  %664 = vmatprep.subr.mxu0 0.0
  %665 = vmatpush1.msra.mxu0 0.0
  %666 = vmatprep.subr.mxu0 0.0
  %667 = vmatpush1.msra.mxu0 0.0
  %668 = vmatprep.subr.mxu0 0.0
  %669 = vmatpush1.msra.mxu0 0.0
  %670 = vmatprep.subr.mxu0 0.0
  %671 = vmatpush1.msra.mxu0 0.0
  %672 = vmatprep.subr.mxu0 0.0
  %673 = vmatpush1.msra.mxu0 0.0
  %674 = vmatprep.subr.mxu0 0.0
  %675 = vmatpush1.msra.mxu0 0.0
  %676 = vmatprep.subr.mxu0 0.0
  %677 = vmatpush1.msra.mxu0 0.0
  %678 = vmatprep.subr.mxu0 0.0
  %679 = vmatpush1.msra.mxu0 0.0
  %680 = vmatprep.subr.mxu0 0.0
  %681 = vmatpush1.msra.mxu0 0.0
  %682 = vmatprep.subr.mxu0 0.0
  %683 = vmatpush1.msra.mxu0 0.0
  %684 = vmatprep.subr.mxu0 0.0
  %685 = vmatpush1.msra.mxu0 0.0
  %686 = vmatprep.subr.mxu0 0.0
  %687 = vmatpush1.msra.mxu0 0.0
  %688 = vmatprep.subr.mxu0 0.0
  %689 = vmatpush1.msra.mxu0 0.0
  %690 = vmatprep.subr.mxu0 0.0
  %691 = vmatpush1.msra.mxu0 0.0
  %692 = vmatprep.subr.mxu0 0.0
  %693 = vmatpush1.msra.mxu0 0.0
  %694 = vmatprep.subr.mxu0 0.0
  %695 = vmatpush1.msra.mxu0 0.0
  %696 = vmatprep.mubr.f32.mxu0 0.0
  %697 = vmatmul.mubr.f32.gmra.mrb[0].mxu0 %v535
  %v698 = vpop.f32.mrb[0].mxu0
  %v699 = vadd.f32 0.0, %v698
  %v700 = vpop.f32.mrb[0].mxu0
  %v701 = vadd.f32 0.0, %v700
  %702 = vmatprep.mubr.f32.mxu0 0.0
  %703 = vmatmul.mubr.f32.gmra.mrb[0].mxu0 %v537
  %v704 = vpop.f32.mrb[0].mxu0
  %v705 = vadd.f32 0.0, %v704
  %v706 = vpop.f32.mrb[0].mxu0
  %v707 = vadd.f32 0.0, %v706
  %708 = vmatprep.mubr.f32.mxu0 0.0
  %709 = vmatmul.mubr.f32.gmra.mrb[0].mxu0 %v539
  %v710 = vpop.f32.mrb[0].mxu0
  %v711 = vadd.f32 0.0, %v710
  %v712 = vpop.f32.mrb[0].mxu0
  %v713 = vadd.f32 0.0, %v712
  %714 = vmatprep.mubr.f32.mxu0 0.0
  %715 = vmatmul.mubr.f32.gmra.mrb[0].mxu0 %v541
  %v716 = vpop.f32.mrb[0].mxu0
  %v717 = vadd.f32 0.0, %v716
  %v718 = vpop.f32.mrb[0].mxu0
  %v719 = vadd.f32 0.0, %v718
  %720 = vdwg.mxu0
  %v721 = vadd.f32 %v380, %v610
  %v722 = vadd.f32 %v382, %v612
  %v723 = vadd.f32 %v469, %v699
  %v724 = vadd.f32 %v471, %v701
  %v725 = vadd.f32 %v386, %v616
  %v726 = vadd.f32 %v388, %v618
  %v727 = vadd.f32 %v475, %v705
  %v728 = vadd.f32 %v477, %v707
  %v729 = vadd.f32 %v392, %v622
  %v730 = vadd.f32 %v394, %v624
  %v731 = vadd.f32 %v481, %v711
  %v732 = vadd.f32 %v483, %v713
  %v733 = vadd.f32 %v398, %v628
  %v734 = vadd.f32 %v400, %v630
  %v735 = vadd.f32 %v487, %v717
  %v736 = vadd.f32 %v489, %v719
  %v737 = vld [vmem:[%s2] sm:$0xf]
  %v739 = vlaneseq
  %v740 = vshrl.u32 %v739, 7
  %v741 = vsub.s32 0, %v740
  %v742 = vrot.slane %v737, %v741
  %v743 = vlaneseq
  %v744 = vshrl.u32 %v743, 7
  %v745 = vsub.s32 1, %v744
  %v746 = vrot.slane %v737, %v745
  %v747 = vlaneseq
  %v748 = vshrl.u32 %v747, 7
  %v749 = vsub.s32 2, %v748
  %v750 = vrot.slane %v737, %v749
  %v751 = vlaneseq
  %v752 = vshrl.u32 %v751, 7
  %v753 = vsub.s32 3, %v752
  %v754 = vrot.slane %v737, %v753
  %v759 = vadd.f32 %v721, %v742
  %v760 = vadd.f32 %v722, %v746
  %v761 = vadd.f32 %v723, %v750
  %v762 = vadd.f32 %v724, %v754
  %v763 = vadd.f32 %v725, %v742
  %v764 = vadd.f32 %v726, %v746
  %v765 = vadd.f32 %v727, %v750
  %v766 = vadd.f32 %v728, %v754
  %v767 = vadd.f32 %v729, %v742
  %v768 = vadd.f32 %v730, %v746
  %v769 = vadd.f32 %v731, %v750
  %v770 = vadd.f32 %v732, %v754
  %v771 = vadd.f32 %v733, %v742
  %v772 = vadd.f32 %v734, %v746
  %v773 = vadd.f32 %v735, %v750
  %v774 = vadd.f32 %v736, %v754
  %v775 = vmax.f32 %v759, 0.0
  %v776 = vmax.f32 %v760, 0.0
  %v777 = vmax.f32 %v761, 0.0
  %v778 = vmax.f32 %v762, 0.0
  %v779 = vmax.f32 %v763, 0.0
  %v780 = vmax.f32 %v764, 0.0
  %v781 = vmax.f32 %v765, 0.0
  %v782 = vmax.f32 %v766, 0.0
  %v783 = vmax.f32 %v767, 0.0
  %v784 = vmax.f32 %v768, 0.0
  %v785 = vmax.f32 %v769, 0.0
  %v786 = vmax.f32 %v770, 0.0
  %v787 = vmax.f32 %v771, 0.0
  %v788 = vmax.f32 %v772, 0.0
  %v789 = vmax.f32 %v773, 0.0
  %v790 = vmax.f32 %v774, 0.0
  %v791 = vld [vmem:[%s3] sm:$0xff]
  %v792 = vld [vmem:[%s3 + $0x8] sm:$0xff]
  %v793 = vld [vmem:[%s3 + $0x10] sm:$0xff]
  %v794 = vld [vmem:[%s3 + $0x18] sm:$0xff]
  %v795 = vld [vmem:[%s3 + $0x20] sm:$0xff]
  %v796 = vld [vmem:[%s3 + $0x28] sm:$0xff]
  %v797 = vld [vmem:[%s3 + $0x30] sm:$0xff]
  %v798 = vld [vmem:[%s3 + $0x38] sm:$0xff]
  %v799 = vld [vmem:[%s3 + $0x40] sm:$0xff]
  %v800 = vld [vmem:[%s3 + $0x48] sm:$0xff]
  %v801 = vld [vmem:[%s3 + $0x50] sm:$0xff]
  %v802 = vld [vmem:[%s3 + $0x58] sm:$0xff]
  %v803 = vld [vmem:[%s3 + $0x60] sm:$0xff]
  %v804 = vld [vmem:[%s3 + $0x68] sm:$0xff]
  %v805 = vld [vmem:[%s3 + $0x70] sm:$0xff]
  %v806 = vld [vmem:[%s3 + $0x78] sm:$0xff]
  %v807 = vld [vmem:[%s3 + $0x80] sm:$0xff]
  %v808 = vld [vmem:[%s3 + $0x88] sm:$0xff]
  %v809 = vld [vmem:[%s3 + $0x90] sm:$0xff]
  %v810 = vld [vmem:[%s3 + $0x98] sm:$0xff]
  %v811 = vld [vmem:[%s3 + $0xa0] sm:$0xff]
  %v812 = vld [vmem:[%s3 + $0xa8] sm:$0xff]
  %v813 = vld [vmem:[%s3 + $0xb0] sm:$0xff]
  %v814 = vld [vmem:[%s3 + $0xb8] sm:$0xff]
  %v815 = vld [vmem:[%s3 + $0xc0] sm:$0xff]
  %v816 = vld [vmem:[%s3 + $0xc8] sm:$0xff]
  %v817 = vld [vmem:[%s3 + $0xd0] sm:$0xff]
  %v818 = vld [vmem:[%s3 + $0xd8] sm:$0xff]
  %v819 = vld [vmem:[%s3 + $0xe0] sm:$0xff]
  %v820 = vld [vmem:[%s3 + $0xe8] sm:$0xff]
  %v821 = vld [vmem:[%s3 + $0xf0] sm:$0xff]
  %v822 = vld [vmem:[%s3 + $0xf8] sm:$0xff]
  %v823 = vld [vmem:[%s3 + $0x100] sm:$0xff]
  %v824 = vld [vmem:[%s3 + $0x108] sm:$0xff]
  %v825 = vld [vmem:[%s3 + $0x110] sm:$0xff]
  %v826 = vld [vmem:[%s3 + $0x118] sm:$0xff]
  %v827 = vld [vmem:[%s3 + $0x120] sm:$0xff]
  %v828 = vld [vmem:[%s3 + $0x128] sm:$0xff]
  %v829 = vld [vmem:[%s3 + $0x130] sm:$0xff]
  %v830 = vld [vmem:[%s3 + $0x138] sm:$0xff]
  %v831 = vld [vmem:[%s3 + $0x140] sm:$0xff]
  %v832 = vld [vmem:[%s3 + $0x148] sm:$0xff]
  %v833 = vld [vmem:[%s3 + $0x150] sm:$0xff]
  %v834 = vld [vmem:[%s3 + $0x158] sm:$0xff]
  %v835 = vld [vmem:[%s3 + $0x160] sm:$0xff]
  %v836 = vld [vmem:[%s3 + $0x168] sm:$0xff]
  %v837 = vld [vmem:[%s3 + $0x170] sm:$0xff]
  %v838 = vld [vmem:[%s3 + $0x178] sm:$0xff]
  %v839 = vld [vmem:[%s3 + $0x180] sm:$0xff]
  %v840 = vld [vmem:[%s3 + $0x188] sm:$0xff]
  %v841 = vld [vmem:[%s3 + $0x190] sm:$0xff]
  %v842 = vld [vmem:[%s3 + $0x198] sm:$0xff]
  %v843 = vld [vmem:[%s3 + $0x1a0] sm:$0xff]
  %v844 = vld [vmem:[%s3 + $0x1a8] sm:$0xff]
  %v845 = vld [vmem:[%s3 + $0x1b0] sm:$0xff]
  %v846 = vld [vmem:[%s3 + $0x1b8] sm:$0xff]
  %v847 = vld [vmem:[%s3 + $0x1c0] sm:$0xff]
  %v848 = vld [vmem:[%s3 + $0x1c8] sm:$0xff]
  %v849 = vld [vmem:[%s3 + $0x1d0] sm:$0xff]
  %v850 = vld [vmem:[%s3 + $0x1d8] sm:$0xff]
  %v851 = vld [vmem:[%s3 + $0x1e0] sm:$0xff]
  %v852 = vld [vmem:[%s3 + $0x1e8] sm:$0xff]
  %v853 = vld [vmem:[%s3 + $0x1f0] sm:$0xff]
  %v854 = vld [vmem:[%s3 + $0x1f8] sm:$0xff]
  %v855 = vld [vmem:[%s4] sm:$0x1]
  %v857 = vlaneseq
  %v858 = vshrl.u32 %v857, 7
  %v859 = vsub.s32 0, %v858
  %v860 = vrot.slane %v855, %v859
  %862 = vmatprep.subr.mxu0 0.0
  %863 = vmatpush1.msra.mxu0 %v791
  %864 = vmatprep.subr.mxu0 0.0
  %865 = vmatpush1.msra.mxu0 %v792
  %866 = vmatprep.subr.mxu0 0.0
  %867 = vmatpush1.msra.mxu0 %v793
  %868 = vmatprep.subr.mxu0 0.0
  %869 = vmatpush1.msra.mxu0 %v794
  %870 = vmatprep.subr.mxu0 0.0
  %871 = vmatpush1.msra.mxu0 %v795
  %872 = vmatprep.subr.mxu0 0.0
  %873 = vmatpush1.msra.mxu0 %v796
  %874 = vmatprep.subr.mxu0 0.0
  %875 = vmatpush1.msra.mxu0 %v797
  %876 = vmatprep.subr.mxu0 0.0
  %877 = vmatpush1.msra.mxu0 %v798
  %878 = vmatprep.subr.mxu0 0.0
  %879 = vmatpush1.msra.mxu0 %v799
  %880 = vmatprep.subr.mxu0 0.0
  %881 = vmatpush1.msra.mxu0 %v800
  %882 = vmatprep.subr.mxu0 0.0
  %883 = vmatpush1.msra.mxu0 %v801
  %884 = vmatprep.subr.mxu0 0.0
  %885 = vmatpush1.msra.mxu0 %v802
  %886 = vmatprep.subr.mxu0 0.0
  %887 = vmatpush1.msra.mxu0 %v803
  %888 = vmatprep.subr.mxu0 0.0
  %889 = vmatpush1.msra.mxu0 %v804
  %890 = vmatprep.subr.mxu0 0.0
  %891 = vmatpush1.msra.mxu0 %v805
  %892 = vmatprep.subr.mxu0 0.0
  %893 = vmatpush1.msra.mxu0 %v806
  %894 = vmatprep.subr.mxu0 0.0
  %895 = vmatpush1.msra.mxu0 %v807
  %896 = vmatprep.subr.mxu0 0.0
  %897 = vmatpush1.msra.mxu0 %v808
  %898 = vmatprep.subr.mxu0 0.0
  %899 = vmatpush1.msra.mxu0 %v809
  %900 = vmatprep.subr.mxu0 0.0
  %901 = vmatpush1.msra.mxu0 %v810
  %902 = vmatprep.subr.mxu0 0.0
  %903 = vmatpush1.msra.mxu0 %v811
  %904 = vmatprep.subr.mxu0 0.0
  %905 = vmatpush1.msra.mxu0 %v812
  %906 = vmatprep.subr.mxu0 0.0
  %907 = vmatpush1.msra.mxu0 %v813
  %908 = vmatprep.subr.mxu0 0.0
  %909 = vmatpush1.msra.mxu0 %v814
  %910 = vmatprep.subr.mxu0 0.0
  %911 = vmatpush1.msra.mxu0 %v815
  %912 = vmatprep.subr.mxu0 0.0
  %913 = vmatpush1.msra.mxu0 %v816
  %914 = vmatprep.subr.mxu0 0.0
  %915 = vmatpush1.msra.mxu0 %v817
  %916 = vmatprep.subr.mxu0 0.0
  %917 = vmatpush1.msra.mxu0 %v818
  %918 = vmatprep.subr.mxu0 0.0
  %919 = vmatpush1.msra.mxu0 %v819
  %920 = vmatprep.subr.mxu0 0.0
  %921 = vmatpush1.msra.mxu0 %v820
  %922 = vmatprep.subr.mxu0 0.0
  %923 = vmatpush1.msra.mxu0 %v821
  %924 = vmatprep.subr.mxu0 0.0
  %925 = vmatpush1.msra.mxu0 %v822
  %926 = vmatprep.mubr.f32.mxu0 %v776
  %927 = vmatmul.mubr.f32.gmra.mrb[0].mxu0 %v775
  %v928 = vpop.f32.mrb[0].mxu0
  %v929 = vadd.f32 %v860, %v928
  %v930 = vpop.f32.mrb[0].mxu0
  %931 = vmatprep.mubr.f32.mxu0 %v780
  %932 = vmatmul.mubr.f32.gmra.mrb[0].mxu0 %v779
  %v933 = vpop.f32.mrb[0].mxu0
  %v934 = vadd.f32 %v860, %v933
  %v935 = vpop.f32.mrb[0].mxu0
  %936 = vmatprep.mubr.f32.mxu0 %v784
  %937 = vmatmul.mubr.f32.gmra.mrb[0].mxu0 %v783
  %v938 = vpop.f32.mrb[0].mxu0
  %v939 = vadd.f32 %v860, %v938
  %v940 = vpop.f32.mrb[0].mxu0
  %941 = vmatprep.mubr.f32.mxu0 %v788
  %942 = vmatmul.mubr.f32.gmra.mrb[0].mxu0 %v787
  %v943 = vpop.f32.mrb[0].mxu0
  %v944 = vadd.f32 %v860, %v943
  %v945 = vpop.f32.mrb[0].mxu0
  %946 = vdwg.mxu0
  %947 = vmatprep.subr.mxu0 0.0
  %948 = vmatpush1.msra.mxu0 %v823
  %949 = vmatprep.subr.mxu0 0.0
  %950 = vmatpush1.msra.mxu0 %v824
  %951 = vmatprep.subr.mxu0 0.0
  %952 = vmatpush1.msra.mxu0 %v825
  %953 = vmatprep.subr.mxu0 0.0
  %954 = vmatpush1.msra.mxu0 %v826
  %955 = vmatprep.subr.mxu0 0.0
  %956 = vmatpush1.msra.mxu0 %v827
  %957 = vmatprep.subr.mxu0 0.0
  %958 = vmatpush1.msra.mxu0 %v828
  %959 = vmatprep.subr.mxu0 0.0
  %960 = vmatpush1.msra.mxu0 %v829
  %961 = vmatprep.subr.mxu0 0.0
  %962 = vmatpush1.msra.mxu0 %v830
  %963 = vmatprep.subr.mxu0 0.0
  %964 = vmatpush1.msra.mxu0 %v831
  %965 = vmatprep.subr.mxu0 0.0
  %966 = vmatpush1.msra.mxu0 %v832
  %967 = vmatprep.subr.mxu0 0.0
  %968 = vmatpush1.msra.mxu0 %v833
  %969 = vmatprep.subr.mxu0 0.0
  %970 = vmatpush1.msra.mxu0 %v834
  %971 = vmatprep.subr.mxu0 0.0
  %972 = vmatpush1.msra.mxu0 %v835
  %973 = vmatprep.subr.mxu0 0.0
  %974 = vmatpush1.msra.mxu0 %v836
  %975 = vmatprep.subr.mxu0 0.0
  %976 = vmatpush1.msra.mxu0 %v837
  %977 = vmatprep.subr.mxu0 0.0
  %978 = vmatpush1.msra.mxu0 %v838
  %979 = vmatprep.subr.mxu0 0.0
  %980 = vmatpush1.msra.mxu0 %v839
  %981 = vmatprep.subr.mxu0 0.0
  %982 = vmatpush1.msra.mxu0 %v840
  %983 = vmatprep.subr.mxu0 0.0
  %984 = vmatpush1.msra.mxu0 %v841
  %985 = vmatprep.subr.mxu0 0.0
  %986 = vmatpush1.msra.mxu0 %v842
  %987 = vmatprep.subr.mxu0 0.0
  %988 = vmatpush1.msra.mxu0 %v843
  %989 = vmatprep.subr.mxu0 0.0
  %990 = vmatpush1.msra.mxu0 %v844
  %991 = vmatprep.subr.mxu0 0.0
  %992 = vmatpush1.msra.mxu0 %v845
  %993 = vmatprep.subr.mxu0 0.0
  %994 = vmatpush1.msra.mxu0 %v846
  %995 = vmatprep.subr.mxu0 0.0
  %996 = vmatpush1.msra.mxu0 %v847
  %997 = vmatprep.subr.mxu0 0.0
  %998 = vmatpush1.msra.mxu0 %v848
  %999 = vmatprep.subr.mxu0 0.0
  %1000 = vmatpush1.msra.mxu0 %v849
  %1001 = vmatprep.subr.mxu0 0.0
  %1002 = vmatpush1.msra.mxu0 %v850
  %1003 = vmatprep.subr.mxu0 0.0
  %1004 = vmatpush1.msra.mxu0 %v851
  %1005 = vmatprep.subr.mxu0 0.0
  %1006 = vmatpush1.msra.mxu0 %v852
  %1007 = vmatprep.subr.mxu0 0.0
  %1008 = vmatpush1.msra.mxu0 %v853
  %1009 = vmatprep.subr.mxu0 0.0
  %1010 = vmatpush1.msra.mxu0 %v854
  %1011 = vmatprep.mubr.f32.mxu0 %v778
  %1012 = vmatmul.mubr.f32.gmra.mrb[0].mxu0 %v777
  %v1013 = vpop.f32.mrb[0].mxu0
  %v1014 = vadd.f32 %v929, %v1013
  %v1015 = vpop.f32.mrb[0].mxu0
  %1016 = vmatprep.mubr.f32.mxu0 %v782
  %1017 = vmatmul.mubr.f32.gmra.mrb[0].mxu0 %v781
  %v1018 = vpop.f32.mrb[0].mxu0
  %v1019 = vadd.f32 %v934, %v1018
  %v1020 = vpop.f32.mrb[0].mxu0
  %1021 = vmatprep.mubr.f32.mxu0 %v786
  %1022 = vmatmul.mubr.f32.gmra.mrb[0].mxu0 %v785
  %v1023 = vpop.f32.mrb[0].mxu0
  %v1024 = vadd.f32 %v939, %v1023
  %v1025 = vpop.f32.mrb[0].mxu0
  %1026 = vmatprep.mubr.f32.mxu0 %v790
  %1027 = vmatmul.mubr.f32.gmra.mrb[0].mxu0 %v789
  %v1028 = vpop.f32.mrb[0].mxu0
  %v1029 = vadd.f32 %v944, %v1028
  %v1030 = vpop.f32.mrb[0].mxu0
  %1031 = vdwg.mxu0
  %vm1032 = vcmask 261120
  %1033 = vst.msk [vmem:[%s7] sm:$0xff] %vm1032, %v1014
  %1034 = vst.msk [vmem:[%s7 + $0x8] sm:$0xff] %vm1032, %v1019
  %1035 = vst.msk [vmem:[%s7 + $0x10] sm:$0xff] %vm1032, %v1024
  %1036 = vst.msk [vmem:[%s7 + $0x18] sm:$0xff] %vm1032, %v1029
  %v1037 = vmax.f32 %v1014, 0.0
  %v1038 = vmax.f32 %v1019, 0.0
  %v1039 = vmax.f32 %v1024, 0.0
  %v1040 = vmax.f32 %v1029, 0.0
  %v1041 = vld [vmem:[%s5] sm:$0xff]
  %v1042 = vld [vmem:[%s5 + $0x8] sm:$0xff]
  %1045 = vrot.lane.b32.xlu0 %v1041, 32
  %v1046 = vpop.permute.xlu0 %1045
  %1047 = vrot.lane.b32.xlu0 %v1042, 32
  %v1048 = vpop.permute.xlu0 %1047
  %v1051 = vmul.f32 %v1037, %v1046
  %v1052 = vmul.f32 %v1038, %v1048
  %v1053 = vmul.f32 %v1039, %v1046
  %v1054 = vmul.f32 %v1040, %v1048
  %1059 = vrot.lane.b32.xlu0 %v1051, 96
  %v1060 = vpop.permute.xlu0 %1059
  %1061 = vrot.lane.b32.xlu0 %v1052, 96
  %v1062 = vpop.permute.xlu0 %1061
  %1063 = vrot.lane.b32.xlu0 %v1053, 96
  %v1064 = vpop.permute.xlu0 %1063
  %1065 = vrot.lane.b32.xlu0 %v1054, 96
  %v1066 = vpop.permute.xlu0 %1065
  %vm1071 = vcmask 130048
  %v1072 = vsel %vm1071, %v1060, 0.0
  %1073 = vadd.xlane.f32.xlu0 %v1072
  %v1074 = vpop.xlane.xlu0 %1073
  %v1075 = vsel %vm1071, %v1062, 0.0
  %1076 = vadd.xlane.f32.xlu0 %v1075
  %v1077 = vpop.xlane.xlu0 %1076
  %v1078 = vsel %vm1071, %v1064, 0.0
  %1079 = vadd.xlane.f32.xlu0 %v1078
  %v1080 = vpop.xlane.xlu0 %1079
  %v1081 = vsel %vm1071, %v1066, 0.0
  %1082 = vadd.xlane.f32.xlu0 %v1081
  %v1083 = vpop.xlane.xlu0 %1082
  %v1088 = vlaneseq
  %v1089 = vand.u32 %v1088, 127
  %v1090 = vlaneseq
  %v1091 = vshrl.u32 %v1090, 7
  %v1092 = vsub.s32 %v1089, %v1091
  %v1093 = vrot.slane %v1074, %v1092
  %v1094 = vadd.s32 %v1089, 4294967288
  %v1095 = vlaneseq
  %v1096 = vshrl.u32 %v1095, 7
  %v1097 = vsub.s32 %v1094, %v1096
  %v1098 = vrot.slane %v1077, %v1097
  %vm1099 = vcmask 130112
  %v1100 = vsel %vm1099, %v1098, %v1093
  %v1101 = vlaneseq
  %v1102 = vshrl.u32 %v1101, 7
  %v1103 = vsub.s32 %v1089, %v1102
  %v1104 = vrot.slane %v1080, %v1103
  %v1105 = vlaneseq
  %v1106 = vshrl.u32 %v1105, 7
  %v1107 = vsub.s32 %v1094, %v1106
  %v1108 = vrot.slane %v1083, %v1107
  %v1109 = vsel %vm1099, %v1108, %v1104
  %vm1110 = vcmask 1041409
  %v1111 = vsel %vm1110, %v1109, %v1100
  %vm1113 = vcmask 123904
  %v1114 = vsel %vm1113, %v1111, 0.0
  %1115 = vadd.xlane.f32.xlu0 %v1114
  %v1116 = vpop.xlane.xlu0 %1115
  %v1117 = vld [vmem:[#allocation2] sm:$0x1]
  %s1118 = vtos %v1117
  %v1119 = vstv %s1118
  %v1120 = vadd.f32 %v1116, %v1119
  %v1121 = vtanh.pop %v1120
  %vm1122 = vcmask 1024
  %1123 = vst.msk [vmem:[%s8] sm:$0x3] %vm1122, %v1121
  // Predicated region
  $region30: #{model_wrapper_forward.1} parent=0 // pred_check
    _
  $region31: #{model_wrapper_forward.1} parent=0 // pred_check_branch
    %1125 = sbr.rel (0) target = $region33
  $region32: #{model_wrapper_forward.1} parent=0 // pred_region
    _
  $region33: #{model_wrapper_forward.1} parent=0 // pred_fallthru
    _
  // Predicated region
  $region34: #{model_wrapper_forward.1} parent=0 // pred_check
    _
  $region35: #{model_wrapper_forward.1} parent=0 // pred_check_branch
    %1127 = sbr.rel (0) target = $region37
  $region36: #{model_wrapper_forward.1} parent=0 // pred_region
    _
  $region37: #{model_wrapper_forward.1} parent=0 // pred_fallthru
    _
  // Predicated region
  $region38: #{model_wrapper_forward.1} parent=0 // pred_check
    _
  $region39: #{model_wrapper_forward.1} parent=0 // pred_check_branch
    %1129 = sbr.rel (0) target = $region41
  $region40: #{model_wrapper_forward.1} parent=0 // pred_region
    _
  $region41: #{model_wrapper_forward.1} parent=0 // pred_fallthru
    _
  // Predicated region
  $region42: #{model_wrapper_forward.1} parent=0 // pred_check
    _
  $region43: #{model_wrapper_forward.1} parent=0 // pred_check_branch
    %1131 = sbr.rel (0) target = $region45
  $region44: #{model_wrapper_forward.1} parent=0 // pred_region
    _
  $region45: #{model_wrapper_forward.1} parent=0 // pred_fallthru
    _

</llo_original>
